<compile_context>
chip_gen: v7x
topology: tpu7x:2x2x1
jax: 0.10.0
libtpu: 0.0.40
codegen_flags: <defaults>
</compile_context>

<pallas_src>
import functools

import jax
import jax.numpy as jnp
from jax.experimental import pallas as pl
from jax.experimental.pallas import tpu as pltpu

N_OUT = 5  # [mu_x, mu_y, sigma_x, sigma_y, rho]


def _round_up(x, m):
    return (x + m - 1) // m * m


def _output_model_kernel(x_ref, w1_ref, b1_ref, w2_ref, b2_ref, w3_ref, b3_ref,
                         out_ref, *, min_stdev):
    x = x_ref[...]                       # [tm, d_k] in the input dtype (f32 or bf16)
    mxu_dtype = x.dtype

    # Layer 1: MXU matmul (f32 accumulate), bias + ReLU in f32.
    h = jnp.dot(x, w1_ref[...], preferred_element_type=jnp.float32) + b1_ref[...]
    h = jnp.maximum(h, 0.0).astype(mxu_dtype)
    # Layer 2.
    h = jnp.dot(h, w2_ref[...], preferred_element_type=jnp.float32) + b2_ref[...]
    h = jnp.maximum(h, 0.0).astype(mxu_dtype)
    # Output head -> raw logits p (f32).
    p = jnp.dot(h, w3_ref[...], preferred_element_type=jnp.float32) + b3_ref[...]  # [tm, 5]

    # Channel heads (all elementwise math kept in f32 — v5e EUP/VPU have no bf16):
    #   cols 0,1: identity; cols 2,3: softplus + min_stdev; col 4: 0.9*tanh.
    sp = jax.nn.softplus(p) + min_stdev
    th = jnp.tanh(p) * 0.9
    col = jax.lax.broadcasted_iota(jnp.int32, p.shape, 1)
    params = jnp.where(col < 2, p, jnp.where(col < 4, sp, th))

    # Single merged output slab: pred in lanes 0:5, params in lanes 5:10.
    out_ref[...] = jnp.concatenate([p, params], axis=-1).astype(out_ref.dtype)


def output_model_forward(agent_decoder_state, w1, b1, w2, b2, w3, b3,
                         *, min_stdev=0.01, block_rows=1024):
    """JAX/Pallas equivalent of OutputModel.forward.

    agent_decoder_state: [T, BK, d_k]   (f32 or bf16 — dtype is preserved)
    w1,w2: [d_k, d_k]   b1,b2: [d_k]
    w3:    [d_k, 5]     b3:    [5]
    Returns (stacked_params [T,BK,5], pred_obs [T,BK,5]) in the input dtype.
    """
    T, BK, d_k = agent_decoder_state.shape
    M = T * BK
    x = agent_decoder_state.reshape(M, d_k)            # free reshape, no dtype cast
    in_dtype = x.dtype

    # Weights ride the MXU in the activation dtype; biases stay f32.
    w1 = w1.astype(in_dtype)
    w2 = w2.astype(in_dtype)
    w3 = w3.astype(in_dtype)
    b1 = b1.reshape(1, d_k).astype(jnp.float32)
    b2 = b2.reshape(1, d_k).astype(jnp.float32)
    b3 = b3.reshape(1, N_OUT).astype(jnp.float32)

    # Row tile: multiple of 8 sublanes, big (fewer grid steps / narrow-output
    # writebacks), but capped at ceil(M/2) so there are always >= 2 grid steps
    # for the v7x megacore to shard.
    half = _round_up(pl.cdiv(M, 2), 8)
    tm = max(8, min(block_rows, half))
    n_blocks = pl.cdiv(M, tm)
    grid = (n_blocks,)

    row_index_map = lambda i: (i, 0)
    row_spec = pl.BlockSpec((tm, d_k), row_index_map)
    if n_blocks >= 3:
        try:
            # Deeper input pipeline hides exposed DMA latency (matters most on v5e).
            row_spec = pl.BlockSpec((tm, d_k), row_index_map,
                                    pipeline_mode=pl.Buffered(3))
        except (AttributeError, TypeError):
            row_spec = pl.BlockSpec((tm, d_k), row_index_map)

    out_spec = pl.BlockSpec((tm, 2 * N_OUT), lambda i: (i, 0))

    def const_spec(shape):
        # Full-array block + constant index_map -> fetched once, VMEM-resident.
        return pl.BlockSpec(shape, lambda i: (0, 0))

    isz = jnp.dtype(in_dtype).itemsize
    cost = pl.CostEstimate(
        flops=2 * M * d_k * (d_k + d_k + N_OUT),
        transcendentals=3 * M * N_OUT,
        bytes_accessed=(M * d_k * isz                            # activations in
                        + (2 * d_k * d_k + d_k * N_OUT) * isz    # weights
                        + (2 * d_k + N_OUT) * 4                  # biases
                        + M * 2 * N_OUT * isz))                  # merged output

    out = pl.pallas_call(
        functools.partial(_output_model_kernel, min_stdev=float(min_stdev)),
        out_shape=jax.ShapeDtypeStruct((M, 2 * N_OUT), in_dtype),
        grid=grid,
        in_specs=[row_spec,
                  const_spec((d_k, d_k)), const_spec((1, d_k)),
                  const_spec((d_k, d_k)), const_spec((1, d_k)),
                  const_spec((d_k, N_OUT)), const_spec((1, N_OUT))],
        out_specs=out_spec,
        compiler_params=pltpu.CompilerParams(dimension_semantics=("parallel",)),
        cost_estimate=cost,
    )(x, w1, b1, w2, b2, w3, b3)

    out = out.reshape(T, BK, 2 * N_OUT)
    pred = out[..., :N_OUT]
    params = out[..., N_OUT:]
    return params, pred


# ------------------------- pure-JAX reference (for checking) -----------------
def output_model_ref(x, w1, b1, w2, b2, w3, b3, *, min_stdev=0.01):
    T, BK, d_k = x.shape
    h = jnp.maximum(x.reshape(-1, d_k) @ w1 + b1, 0.0)
    h = jnp.maximum(h @ w2 + b2, 0.0)
    p = (h @ w3 + b3).reshape(T, BK, N_OUT)
    x_mean = p[..., 0]
    y_mean = p[..., 1]
    x_sigma = jax.nn.softplus(p[..., 2]) + min_stdev
    y_sigma = jax.nn.softplus(p[..., 3]) + min_stdev
    rho = jnp.tanh(p[..., 4]) * 0.9
    return jnp.stack([x_mean, y_mean, x_sigma, y_sigma, rho], axis=2), p


if __name__ == "__main__":
    T, B, K, d_k = 8, 2, 6, 64      # seq=8, batch=2, modes=6, hidden d_k=64
    BK = B * K

    key = jax.random.PRNGKey(0)
    kx, k1, k2, k3 = jax.random.split(key, 4)

    def xavier_normal(k, fan_in, fan_out, gain):
        std = gain * (2.0 / (fan_in + fan_out)) ** 0.5
        return std * jax.random.normal(k, (fan_in, fan_out), jnp.float32)

    gain = 2.0 ** 0.5                # np.sqrt(2) as in the PyTorch init_
    w1 = xavier_normal(k1, d_k, d_k, gain)
    b1 = jnp.zeros((d_k,), jnp.float32)
    w2 = xavier_normal(k2, d_k, d_k, gain)
    b2 = jnp.zeros((d_k,), jnp.float32)
    w3 = xavier_normal(k3, d_k, N_OUT, gain)
    b3 = jnp.zeros((N_OUT,), jnp.float32)

    agent_decoder_state = jax.random.normal(kx, (T, BK, d_k), jnp.float32)

    # --- f32 path (matches the PyTorch module exactly) -----------------------
    params, pred = output_model_forward(agent_decoder_state, w1, b1, w2, b2, w3, b3)
    params = jax.block_until_ready(params)
    pred = jax.block_until_ready(pred)

    ref_params, ref_pred = output_model_ref(agent_decoder_state, w1, b1, w2, b2, w3, b3)

    assert params.shape == (T, BK, N_OUT) and pred.shape == (T, BK, N_OUT)
    assert bool(jnp.all(jnp.isfinite(params))) and bool(jnp.all(jnp.isfinite(pred)))
    assert jnp.allclose(pred, ref_pred, rtol=2e-3, atol=2e-3), \
        float(jnp.max(jnp.abs(pred - ref_pred)))
    assert jnp.allclose(params, ref_params, rtol=2e-3, atol=2e-3), \
        float(jnp.max(jnp.abs(params - ref_params)))
    # sigma channels must be strictly positive, rho in (-0.9, 0.9)
    assert bool(jnp.all(params[..., 2:4] > 0.0))
    assert bool(jnp.all(jnp.abs(params[..., 4]) < 0.9))

    # --- bf16 activation-stream path (halves the dominant HBM read) ----------
    params_bf, pred_bf = output_model_forward(
        agent_decoder_state.astype(jnp.bfloat16), w1, b1, w2, b2, w3, b3)
    params_bf = jax.block_until_ready(params_bf)
    pred_bf = jax.block_until_ready(pred_bf)
    assert params_bf.dtype == jnp.bfloat16 and pred_bf.dtype == jnp.bfloat16
    assert bool(jnp.all(jnp.isfinite(params_bf.astype(jnp.float32))))
    assert jnp.allclose(pred_bf.astype(jnp.float32), ref_pred, rtol=0.05, atol=0.15)
    assert jnp.allclose(params_bf.astype(jnp.float32), ref_params, rtol=0.05, atol=0.15)

    print("KERNEL_OK")
</pallas_src>

<mosaic_0001>
module attributes {stable_mosaic.version = 11 : i64} {
  func.func @_output_model_kernel(%arg0: i32, %arg1: memref<48x64xf32, #tpu.memory_space<vmem>>, %arg2: memref<64x64xf32, #tpu.memory_space<vmem>>, %arg3: memref<1x64xf32, #tpu.memory_space<vmem>>, %arg4: memref<64x64xf32, #tpu.memory_space<vmem>>, %arg5: memref<1x64xf32, #tpu.memory_space<vmem>>, %arg6: memref<64x5xf32, #tpu.memory_space<vmem>>, %arg7: memref<1x5xf32, #tpu.memory_space<vmem>>, %arg8: memref<48x10xf32, #tpu.memory_space<vmem>>) attributes {dimension_semantics = [#tpu.dimension_semantics<parallel>], iteration_bounds = array<i64: 2>, scalar_prefetch = 0 : i64, scratch_operands = 0 : i64, tpu.core_type = #tpu.core_type<tc>, window_params = [{transform_indices = @transform_0, window_bounds = array<i64: 48, 64>}, {pipeline_mode = #tpu.pipeline_mode<synchronous>, transform_indices = @transform_1, window_bounds = array<i64: 64, 64>}, {pipeline_mode = #tpu.pipeline_mode<synchronous>, transform_indices = @transform_2, window_bounds = array<i64: 1, 64>}, {pipeline_mode = #tpu.pipeline_mode<synchronous>, transform_indices = @transform_3, window_bounds = array<i64: 64, 64>}, {pipeline_mode = #tpu.pipeline_mode<synchronous>, transform_indices = @transform_4, window_bounds = array<i64: 1, 64>}, {pipeline_mode = #tpu.pipeline_mode<synchronous>, transform_indices = @transform_5, window_bounds = array<i64: 64, 5>}, {pipeline_mode = #tpu.pipeline_mode<synchronous>, transform_indices = @transform_6, window_bounds = array<i64: 1, 5>}, {transform_indices = @transform_7, window_bounds = array<i64: 48, 10>}]} {
    %c0 = arith.constant 0 : index
    %c0_0 = arith.constant 0 : index
    %0 = vector.load %arg1[%c0, %c0_0] : memref<48x64xf32, #tpu.memory_space<vmem>>, vector<48x64xf32>
    %c0_1 = arith.constant 0 : index
    %c0_2 = arith.constant 0 : index
    %1 = vector.load %arg2[%c0_1, %c0_2] : memref<64x64xf32, #tpu.memory_space<vmem>>, vector<64x64xf32>
    %cst = arith.constant dense<0.000000e+00> : vector<48x64xf32>
    %2 = tpu.matmul %0, %1, %cst {dimension_numbers = #tpu.dot_dimension_numbers<[1], [0], [0], [1], [0, 0, 1, 1], [], []>} : vector<48x64xf32>, vector<64x64xf32>, vector<48x64xf32> -> vector<48x64xf32>
    %c0_3 = arith.constant 0 : index
    %c0_4 = arith.constant 0 : index
    %3 = vector.load %arg3[%c0_3, %c0_4] : memref<1x64xf32, #tpu.memory_space<vmem>>, vector<1x64xf32>
    %4 = vector.broadcast %3 : vector<1x64xf32> to vector<48x64xf32>
    %5 = arith.addf %2, %4 : vector<48x64xf32>
    %cst_5 = arith.constant 0.000000e+00 : f32
    %6 = vector.broadcast %cst_5 : f32 to vector<48x64xf32>
    %7 = arith.maximumf %5, %6 : vector<48x64xf32>
    %c0_6 = arith.constant 0 : index
    %c0_7 = arith.constant 0 : index
    %8 = vector.load %arg4[%c0_6, %c0_7] : memref<64x64xf32, #tpu.memory_space<vmem>>, vector<64x64xf32>
    %cst_8 = arith.constant dense<0.000000e+00> : vector<48x64xf32>
    %9 = tpu.matmul %7, %8, %cst_8 {dimension_numbers = #tpu.dot_dimension_numbers<[1], [0], [0], [1], [0, 0, 1, 1], [], []>} : vector<48x64xf32>, vector<64x64xf32>, vector<48x64xf32> -> vector<48x64xf32>
    %c0_9 = arith.constant 0 : index
    %c0_10 = arith.constant 0 : index
    %10 = vector.load %arg5[%c0_9, %c0_10] : memref<1x64xf32, #tpu.memory_space<vmem>>, vector<1x64xf32>
    %11 = vector.broadcast %10 : vector<1x64xf32> to vector<48x64xf32>
    %12 = arith.addf %9, %11 : vector<48x64xf32>
    %cst_11 = arith.constant 0.000000e+00 : f32
    %13 = vector.broadcast %cst_11 : f32 to vector<48x64xf32>
    %14 = arith.maximumf %12, %13 : vector<48x64xf32>
    %c0_12 = arith.constant 0 : index
    %c0_13 = arith.constant 0 : index
    %15 = vector.load %arg6[%c0_12, %c0_13] : memref<64x5xf32, #tpu.memory_space<vmem>>, vector<64x5xf32>
    %cst_14 = arith.constant dense<0.000000e+00> : vector<48x5xf32>
    %16 = tpu.matmul %14, %15, %cst_14 {dimension_numbers = #tpu.dot_dimension_numbers<[1], [0], [0], [1], [0, 0, 1, 1], [], []>} : vector<48x64xf32>, vector<64x5xf32>, vector<48x5xf32> -> vector<48x5xf32>
    %c0_15 = arith.constant 0 : index
    %c0_16 = arith.constant 0 : index
    %17 = vector.load %arg7[%c0_15, %c0_16] : memref<1x5xf32, #tpu.memory_space<vmem>>, vector<1x5xf32>
    %18 = vector.broadcast %17 : vector<1x5xf32> to vector<48x5xf32>
    %19 = arith.addf %16, %18 : vector<48x5xf32>
    %cst_17 = arith.constant 0.000000e+00 : f32
    %20 = vector.broadcast %cst_17 : f32 to vector<48x5xf32>
    %21 = arith.maximumf %19, %20 : vector<48x5xf32>
    %22 = vector.broadcast %cst_17 : f32 to vector<48x5xf32>
    %23 = arith.subf %19, %22 : vector<48x5xf32>
    %24 = arith.cmpf one, %23, %23 : vector<48x5xf32>
    %25 = vector.broadcast %cst_17 : f32 to vector<48x5xf32>
    %26 = arith.addf %19, %25 : vector<48x5xf32>
    %27 = math.absf %23 : vector<48x5xf32>
    %cst_18 = arith.constant 0.000000e+00 : f32
    %28 = vector.broadcast %cst_18 : f32 to vector<48x5xf32>
    %29 = arith.subf %28, %27 : vector<48x5xf32>
    %30 = math.exp %29 : vector<48x5xf32>
    %31 = math.log1p %30 : vector<48x5xf32>
    %32 = arith.addf %21, %31 : vector<48x5xf32>
    %33 = arith.select %24, %26, %32 : vector<48x5xi1>, vector<48x5xf32>
    %cst_19 = arith.constant 0.00999999977 : f32
    %34 = vector.broadcast %cst_19 : f32 to vector<48x5xf32>
    %35 = arith.addf %33, %34 : vector<48x5xf32>
    %36 = math.tanh %19 : vector<48x5xf32>
    %cst_20 = arith.constant 0.899999976 : f32
    %37 = vector.broadcast %cst_20 : f32 to vector<48x5xf32>
    %38 = arith.mulf %36, %37 : vector<48x5xf32>
    %39 = tpu.iota {dimensions = array<i32: 1>} : vector<48x5xi32>
    %c2_i32 = arith.constant 2 : i32
    %40 = vector.broadcast %c2_i32 : i32 to vector<48x5xi32>
    %41 = arith.cmpi slt, %39, %40 : vector<48x5xi32>
    %c4_i32 = arith.constant 4 : i32
    %42 = vector.broadcast %c4_i32 : i32 to vector<48x5xi32>
    %43 = arith.cmpi slt, %39, %42 : vector<48x5xi32>
    %44 = arith.select %43, %35, %38 : vector<48x5xi1>, vector<48x5xf32>
    %45 = arith.select %41, %19, %44 : vector<48x5xi1>, vector<48x5xf32>
    %46 = tpu.concatenate %19, %45 in 1 : vector<48x5xf32>, vector<48x5xf32> -> vector<48x10xf32>
    %c0_21 = arith.constant 0 : index
    %c0_22 = arith.constant 0 : index
    %47 = vector.load %arg8[%c0_21, %c0_22] : memref<48x10xf32, #tpu.memory_space<vmem>>, vector<48x10xf32>
    tpu.vector_store %arg8[%c0_21, %c0_22], %46 {strides = array<i32>} : memref<48x10xf32, #tpu.memory_space<vmem>>, vector<48x10xf32>,
    return
  }
  func.func @transform_0(%arg0: i32) -> (i32, i32) {
    %c0_i32 = arith.constant 0 : i32
    %c0_i32_0 = arith.constant 0 : i32
    return %arg0, %c0_i32 : i32, i32
  }
  func.func @transform_1(%arg0: i32) -> (i32, i32) {
    %c0_i32 = arith.constant 0 : i32
    %c0_i32_0 = arith.constant 0 : i32
    %c0_i32_1 = arith.constant 0 : i32
    return %c0_i32, %c0_i32_0 : i32, i32
  }
  func.func @transform_2(%arg0: i32) -> (i32, i32) {
    %c0_i32 = arith.constant 0 : i32
    %c0_i32_0 = arith.constant 0 : i32
    %c0_i32_1 = arith.constant 0 : i32
    return %c0_i32, %c0_i32_0 : i32, i32
  }
  func.func @transform_3(%arg0: i32) -> (i32, i32) {
    %c0_i32 = arith.constant 0 : i32
    %c0_i32_0 = arith.constant 0 : i32
    %c0_i32_1 = arith.constant 0 : i32
    return %c0_i32, %c0_i32_0 : i32, i32
  }
  func.func @transform_4(%arg0: i32) -> (i32, i32) {
    %c0_i32 = arith.constant 0 : i32
    %c0_i32_0 = arith.constant 0 : i32
    %c0_i32_1 = arith.constant 0 : i32
    return %c0_i32, %c0_i32_0 : i32, i32
  }
  func.func @transform_5(%arg0: i32) -> (i32, i32) {
    %c0_i32 = arith.constant 0 : i32
    %c0_i32_0 = arith.constant 0 : i32
    %c0_i32_1 = arith.constant 0 : i32
    return %c0_i32, %c0_i32_0 : i32, i32
  }
  func.func @transform_6(%arg0: i32) -> (i32, i32) {
    %c0_i32 = arith.constant 0 : i32
    %c0_i32_0 = arith.constant 0 : i32
    %c0_i32_1 = arith.constant 0 : i32
    return %c0_i32, %c0_i32_0 : i32, i32
  }
  func.func @transform_7(%arg0: i32) -> (i32, i32) {
    %c0_i32 = arith.constant 0 : i32
    %c0_i32_0 = arith.constant 0 : i32
    return %arg0, %c0_i32 : i32, i32
  }
}

</mosaic_0001>

<llo_original>
// kernel: tpu_custom_call.1
$region0: #{tpu_custom_call.1}
  #allocation0 [shape = 'u32[]', space=smem, size = 0x4, offset = 0x4, fixed_abs, tag = 'smem constant byte address 0x4 - core index']
  #allocation1 [shape = 'u32[144,128]{1,0:T(1,128)}', space=vmem, size = 0x12000, scoped, tag = 'internal scratch']
  %s0 = inlined_call_operand.vmem [shape: f32[96,64], index: 0, kind: input, shape index: {}]
  %s1 = inlined_call_operand.vmem [shape: f32[64,64], index: 1, kind: input, shape index: {}]
  %s2 = inlined_call_operand.vmem [shape: f32[1,64], index: 2, kind: input, shape index: {}]
  %s3 = inlined_call_operand.vmem [shape: f32[64,64], index: 3, kind: input, shape index: {}]
  %s4 = inlined_call_operand.vmem [shape: f32[1,64], index: 4, kind: input, shape index: {}]
  %s5 = inlined_call_operand.vmem [shape: f32[64,5], index: 5, kind: input, shape index: {}]
  %s6 = inlined_call_operand.vmem [shape: f32[1,5], index: 6, kind: input, shape index: {}]
  %s7 = inlined_call_operand.vmem [shape: f32[96,10], index: 7, kind: output, shape index: {}]
  %s8 = sld [smem:[#allocation0]]
  $region61: #{tpu_custom_call.1} parent=0
    _
  %s10 = ssub.s32 1, %s8
  %s11 = scalar_select 0, %s10, %s8
  loop: start=0, step=1, limit=4
  $region2: #{tpu_custom_call.1} parent=0 // loop_pre_header
    _
  $region3: #{tpu_custom_call.1} parent=0 // loop_header
    %s13 = sphi 0, %s17
    %p14 = scmp.ge.s32.totalorder %s13, 4
    %s23 = sphi 0, %s25
    %s26 = sphi 0, %s23
    %s27 = sphi 0, %s26
    %s43 = sphi 0, %s27
    %s47 = sphi 0, %s47
    %s49 = sphi 0, %s47
    %s50 = sphi 0, %s49
    %s64 = sphi 0, %s50
    %s68 = sphi 0, %s68
    %s70 = sphi 0, %s68
    %s71 = sphi 0, %s70
    %s85 = sphi 0, %s71
    %s89 = sphi 0, %s89
    %s91 = sphi 0, %s89
    %s92 = sphi 0, %s91
    %s106 = sphi 0, %s92
    %s110 = sphi 0, %s110
    %s112 = sphi 0, %s110
    %s113 = sphi 0, %s112
    %s127 = sphi 0, %s113
    %s131 = sphi 0, %s131
    %s133 = sphi 0, %s131
    %s134 = sphi 0, %s133
    %s148 = sphi 0, %s134
    %s152 = sphi 0, %s152
    %s154 = sphi 0, %s152
    %s155 = sphi 0, %s154
    %s169 = sphi 0, %s155
    %s175 = sphi 0, %s177
    %s178 = sphi 0, %s175
    %s179 = sphi 0, %s178
    %s195 = sphi 0, %s179
  $region4: #{tpu_custom_call.1} parent=0 // loop_header_branch
    %16 = sbr.rel (%p14) target = $region8
  $region5: #{tpu_custom_call.1} parent=0 // loop_body
    %s18 = ssub.s32 %s13, 1
    %s19 = ssub.s32 %s13, 2
    %s20 = sadd.s32 %s13, 1
    %s21 = ssub.s32 %s13, %s20
    %p22 = scmp.eq.s32.totalorder %s21, 0
    %s24 = sadd.s32 %s23, 1
    %s25 = scalar_select %p22, %s23, %s24
    %p28 = pneg %p22
    %p29 = scmp.eq.s32.totalorder %s13, 1
    %p30 = por %p28, %p29
    %p31 = scmp.ne.s32.totalorder %s23, %s26
    %p32 = scmp.eq.s32.totalorder %s13, 0
    %p33 = por %p31, %p32
    %p34 = scmp.ne.s32.totalorder %s23, %s26
    %p35 = scmp.eq.s32.totalorder %s18, 1
    %p36 = por %p34, %p35
    %p37 = scmp.ne.s32.totalorder %s26, %s27
    %p38 = scmp.eq.s32.totalorder %s18, 0
    %p39 = por %p37, %p38
    %p40 = scmp.ne.s32.totalorder %s26, %s27
    %p41 = scmp.eq.s32.totalorder %s19, 1
    %p42 = por %p40, %p41
    %p44 = scmp.ne.s32.totalorder %s27, %s43
    %p45 = scmp.eq.s32.totalorder %s19, 0
    %p46 = por %p44, %p45
    %s48 = sadd.s32 %s47, 1
    %p51 = scmp.eq.s32.totalorder %s13, 1
    %p52 = scmp.ne.s32.totalorder %s47, %s49
    %p53 = scmp.eq.s32.totalorder %s13, 0
    %p54 = por %p52, %p53
    %p55 = scmp.ne.s32.totalorder %s47, %s49
    %p56 = scmp.eq.s32.totalorder %s18, 1
    %p57 = por %p55, %p56
    %p58 = scmp.ne.s32.totalorder %s49, %s50
    %p59 = scmp.eq.s32.totalorder %s18, 0
    %p60 = por %p58, %p59
    %p61 = scmp.ne.s32.totalorder %s49, %s50
    %p62 = scmp.eq.s32.totalorder %s19, 1
    %p63 = por %p61, %p62
    %p65 = scmp.ne.s32.totalorder %s50, %s64
    %p66 = scmp.eq.s32.totalorder %s19, 0
    %p67 = por %p65, %p66
    %s69 = sadd.s32 %s68, 1
    %p72 = scmp.eq.s32.totalorder %s13, 1
    %p73 = scmp.ne.s32.totalorder %s68, %s70
    %p74 = scmp.eq.s32.totalorder %s13, 0
    %p75 = por %p73, %p74
    %p76 = scmp.ne.s32.totalorder %s68, %s70
    %p77 = scmp.eq.s32.totalorder %s18, 1
    %p78 = por %p76, %p77
    %p79 = scmp.ne.s32.totalorder %s70, %s71
    %p80 = scmp.eq.s32.totalorder %s18, 0
    %p81 = por %p79, %p80
    %p82 = scmp.ne.s32.totalorder %s70, %s71
    %p83 = scmp.eq.s32.totalorder %s19, 1
    %p84 = por %p82, %p83
    %p86 = scmp.ne.s32.totalorder %s71, %s85
    %p87 = scmp.eq.s32.totalorder %s19, 0
    %p88 = por %p86, %p87
    %s90 = sadd.s32 %s89, 1
    %p93 = scmp.eq.s32.totalorder %s13, 1
    %p94 = scmp.ne.s32.totalorder %s89, %s91
    %p95 = scmp.eq.s32.totalorder %s13, 0
    %p96 = por %p94, %p95
    %p97 = scmp.ne.s32.totalorder %s89, %s91
    %p98 = scmp.eq.s32.totalorder %s18, 1
    %p99 = por %p97, %p98
    %p100 = scmp.ne.s32.totalorder %s91, %s92
    %p101 = scmp.eq.s32.totalorder %s18, 0
    %p102 = por %p100, %p101
    %p103 = scmp.ne.s32.totalorder %s91, %s92
    %p104 = scmp.eq.s32.totalorder %s19, 1
    %p105 = por %p103, %p104
    %p107 = scmp.ne.s32.totalorder %s92, %s106
    %p108 = scmp.eq.s32.totalorder %s19, 0
    %p109 = por %p107, %p108
    %s111 = sadd.s32 %s110, 1
    %p114 = scmp.eq.s32.totalorder %s13, 1
    %p115 = scmp.ne.s32.totalorder %s110, %s112
    %p116 = scmp.eq.s32.totalorder %s13, 0
    %p117 = por %p115, %p116
    %p118 = scmp.ne.s32.totalorder %s110, %s112
    %p119 = scmp.eq.s32.totalorder %s18, 1
    %p120 = por %p118, %p119
    %p121 = scmp.ne.s32.totalorder %s112, %s113
    %p122 = scmp.eq.s32.totalorder %s18, 0
    %p123 = por %p121, %p122
    %p124 = scmp.ne.s32.totalorder %s112, %s113
    %p125 = scmp.eq.s32.totalorder %s19, 1
    %p126 = por %p124, %p125
    %p128 = scmp.ne.s32.totalorder %s113, %s127
    %p129 = scmp.eq.s32.totalorder %s19, 0
    %p130 = por %p128, %p129
    %s132 = sadd.s32 %s131, 1
    %p135 = scmp.eq.s32.totalorder %s13, 1
    %p136 = scmp.ne.s32.totalorder %s131, %s133
    %p137 = scmp.eq.s32.totalorder %s13, 0
    %p138 = por %p136, %p137
    %p139 = scmp.ne.s32.totalorder %s131, %s133
    %p140 = scmp.eq.s32.totalorder %s18, 1
    %p141 = por %p139, %p140
    %p142 = scmp.ne.s32.totalorder %s133, %s134
    %p143 = scmp.eq.s32.totalorder %s18, 0
    %p144 = por %p142, %p143
    %p145 = scmp.ne.s32.totalorder %s133, %s134
    %p146 = scmp.eq.s32.totalorder %s19, 1
    %p147 = por %p145, %p146
    %p149 = scmp.ne.s32.totalorder %s134, %s148
    %p150 = scmp.eq.s32.totalorder %s19, 0
    %p151 = por %p149, %p150
    %s153 = sadd.s32 %s152, 1
    %p156 = scmp.eq.s32.totalorder %s13, 1
    %p157 = scmp.ne.s32.totalorder %s152, %s154
    %p158 = scmp.eq.s32.totalorder %s13, 0
    %p159 = por %p157, %p158
    %p160 = scmp.ne.s32.totalorder %s152, %s154
    %p161 = scmp.eq.s32.totalorder %s18, 1
    %p162 = por %p160, %p161
    %p163 = scmp.ne.s32.totalorder %s154, %s155
    %p164 = scmp.eq.s32.totalorder %s18, 0
    %p165 = por %p163, %p164
    %p166 = scmp.ne.s32.totalorder %s154, %s155
    %p167 = scmp.eq.s32.totalorder %s19, 1
    %p168 = por %p166, %p167
    %p170 = scmp.ne.s32.totalorder %s155, %s169
    %p171 = scmp.eq.s32.totalorder %s19, 0
    %p172 = por %p170, %p171
    %s173 = ssub.s32 %s13, %s20
    %p174 = scmp.eq.s32.totalorder %s173, 0
    %s176 = sadd.s32 %s175, 1
    %s177 = scalar_select %p174, %s175, %s176
    %p180 = pneg %p174
    %p181 = scmp.eq.s32.totalorder %s13, 1
    %p182 = por %p180, %p181
    %p183 = scmp.ne.s32.totalorder %s175, %s178
    %p184 = scmp.eq.s32.totalorder %s13, 0
    %p185 = por %p183, %p184
    %p186 = scmp.ne.s32.totalorder %s175, %s178
    %p187 = scmp.eq.s32.totalorder %s18, 1
    %p188 = por %p186, %p187
    %p189 = scmp.ne.s32.totalorder %s178, %s179
    %p190 = scmp.eq.s32.totalorder %s18, 0
    %p191 = por %p189, %p190
    %p192 = scmp.ne.s32.totalorder %s178, %s179
    %p193 = scmp.eq.s32.totalorder %s19, 1
    %p194 = por %p192, %p193
    %p196 = scmp.ne.s32.totalorder %s179, %s195
    %p197 = scmp.eq.s32.totalorder %s19, 0
    %p198 = por %p196, %p197
    %p199 = scmp.le.s32.totalorder 1, %s13
    %p200 = scmp.lt.s32.totalorder %s13, 3
    %p201 = pnand %p199, %p200
    %p202 = pneg %p201
    // Predicated region
    $region9: #{tpu_custom_call.1} parent=5 // pred_check
      _
    $region10: #{tpu_custom_call.1} parent=5 // pred_check_branch
      %204 = sbr.rel (%p201) target = $region12
    $region11: #{tpu_custom_call.1} parent=5 // pred_region
      %s205 = ssub.s32 %s13, 1
      // Predicated region
      $region13: #{tpu_custom_call.1} parent=11 // pred_check
        %p206 = pneg %p60
      $region14: #{tpu_custom_call.1} parent=11 // pred_check_branch
        %208 = sbr.rel (%p206) target = $region16
      $region15: #{tpu_custom_call.1} parent=11 // pred_region
        _
      $region16: #{tpu_custom_call.1} parent=11 // pred_fallthru
        _
      // Predicated region
      $region17: #{tpu_custom_call.1} parent=11 // pred_check
        %p209 = pneg %p81
      $region18: #{tpu_custom_call.1} parent=11 // pred_check_branch
        %211 = sbr.rel (%p209) target = $region20
      $region19: #{tpu_custom_call.1} parent=11 // pred_region
        _
      $region20: #{tpu_custom_call.1} parent=11 // pred_fallthru
        _
      // Predicated region
      $region21: #{tpu_custom_call.1} parent=11 // pred_check
        %p212 = pneg %p102
      $region22: #{tpu_custom_call.1} parent=11 // pred_check_branch
        %214 = sbr.rel (%p212) target = $region24
      $region23: #{tpu_custom_call.1} parent=11 // pred_region
        _
      $region24: #{tpu_custom_call.1} parent=11 // pred_fallthru
        _
      // Predicated region
      $region25: #{tpu_custom_call.1} parent=11 // pred_check
        %p215 = pneg %p123
      $region26: #{tpu_custom_call.1} parent=11 // pred_check_branch
        %217 = sbr.rel (%p215) target = $region28
      $region27: #{tpu_custom_call.1} parent=11 // pred_region
        _
      $region28: #{tpu_custom_call.1} parent=11 // pred_fallthru
        _
      // Predicated region
      $region29: #{tpu_custom_call.1} parent=11 // pred_check
        %p218 = pneg %p144
      $region30: #{tpu_custom_call.1} parent=11 // pred_check_branch
        %220 = sbr.rel (%p218) target = $region32
      $region31: #{tpu_custom_call.1} parent=11 // pred_region
        _
      $region32: #{tpu_custom_call.1} parent=11 // pred_fallthru
        _
      // Predicated region
      $region33: #{tpu_custom_call.1} parent=11 // pred_check
        %p221 = pneg %p165
      $region34: #{tpu_custom_call.1} parent=11 // pred_check_branch
        %223 = sbr.rel (%p221) target = $region36
      $region35: #{tpu_custom_call.1} parent=11 // pred_region
        _
      $region36: #{tpu_custom_call.1} parent=11 // pred_fallthru
        _
    $region12: #{tpu_custom_call.1} parent=5 // pred_fallthru
      _
    %p224 = scmp.lt.s32.totalorder %s13, 2
    // Predicated region
    $region37: #{tpu_custom_call.1} parent=5 // pred_check
      %p225 = pneg %p224
    $region38: #{tpu_custom_call.1} parent=5 // pred_check_branch
      %227 = sbr.rel (%p225) target = $region40
    $region39: #{tpu_custom_call.1} parent=5 // pred_region
      // Predicated region
      $region41: #{tpu_custom_call.1} parent=39 // pred_check
        %p228 = pneg %p33
      $region42: #{tpu_custom_call.1} parent=39 // pred_check_branch
        %230 = sbr.rel (%p228) target = $region44
      $region43: #{tpu_custom_call.1} parent=39 // pred_region
        %s231 = smul.u32 6, %s13
        %p232 = scmp.lt.s32.totalorder %s231, 11
        %s233 = scalar_select %p232, %s231, 11
        %s234 = smul.addr %s233, 8
        %s235 = scalar_lea.vmem %s0, %s234
        %s236 = smul.u32 6, %s13
      $region44: #{tpu_custom_call.1} parent=39 // pred_fallthru
        _
    $region40: #{tpu_custom_call.1} parent=5 // pred_fallthru
      _
    %p237 = scmp.le.s32.totalorder 1, %s13
    %p238 = scmp.lt.s32.totalorder %s13, 3
    %p239 = pnand %p237, %p238
    %p240 = pneg %p239
    // Predicated region
    $region45: #{tpu_custom_call.1} parent=5 // pred_check
      _
    $region46: #{tpu_custom_call.1} parent=5 // pred_check_branch
      %242 = sbr.rel (%p239) target = $region48
    $region47: #{tpu_custom_call.1} parent=5 // pred_region
      %s243 = ssub.s32 %s13, 1
      %s244 = smul.u32 6, %s18
      %p245 = scmp.lt.s32.totalorder %s244, 11
      %s246 = scalar_select %p245, %s244, 11
      %s247 = smul.addr %s246, 8
      %s248 = scalar_lea.vmem %s0, %s247
      %p249 = pneg %p39
      %p250 = pneg %p36
      %p251 = pneg %p60
      %p252 = pneg %p57
      %p253 = pneg %p81
      %p254 = pneg %p78
      %p255 = pneg %p102
      %p256 = pneg %p99
      %p257 = pneg %p123
      %p258 = pneg %p120
      %p259 = pneg %p144
      %p260 = pneg %p141
      %p261 = pneg %p165
      %p262 = pneg %p162
      %p263 = pneg %p191
      %p264 = pneg %p188
      %s265 = smul.u32 6, %s18
      %p266 = scmp.lt.s32.totalorder %s265, 11
      %s267 = scalar_select %p266, %s265, 11
      %s268 = smul.addr %s267, 8
      %s269 = scalar_lea.vmem %s7, %s268
      %s270 = smul.u32 6, %s18
      %p271 = scmp.lt.s32.totalorder %s270, 11
      %s272 = scalar_select %p271, %s270, 11
      %s273 = smul.addr %s272, 8
      %s274 = scalar_lea.vmem %s0, %s273
      %s275 = smul.u32 6, %s18
      %s276 = smul.u32 6, %s18
      %p277 = scmp.lt.s32.totalorder %s276, 11
      %s278 = scalar_select %p277, %s276, 11
      %s279 = smul.addr %s278, 8
      %s280 = scalar_lea.vmem %s7, %s279
      %s281 = smul.u32 6, %s18
      %v282 = vld [vmem:[%s274] sm:$0xff]
      %v283 = vld [vmem:[%s274 + $0x8] sm:$0xff]
      %v284 = vld [vmem:[%s274 + $0x10] sm:$0xff]
      %v285 = vld [vmem:[%s274 + $0x18] sm:$0xff]
      %v286 = vld [vmem:[%s274 + $0x20] sm:$0xff]
      %v287 = vld [vmem:[%s274 + $0x28] sm:$0xff]
      %v288 = vld [vmem:[%s1] sm:$0xff]
      %v289 = vld [vmem:[%s1 + $0x8] sm:$0xff]
      %v290 = vld [vmem:[%s1 + $0x10] sm:$0xff]
      %v291 = vld [vmem:[%s1 + $0x18] sm:$0xff]
      %v292 = vld [vmem:[%s1 + $0x20] sm:$0xff]
      %v293 = vld [vmem:[%s1 + $0x28] sm:$0xff]
      %v294 = vld [vmem:[%s1 + $0x30] sm:$0xff]
      %v295 = vld [vmem:[%s1 + $0x38] sm:$0xff]
      %v296 = vld [vmem:[%s2] sm:$0x1]
      %v298 = vlaneseq
      %v299 = vshrl.u32 %v298, 7
      %v300 = vsub.s32 0, %v299
      %v301 = vrot.slane %v296, %v300
      %vm303 = vcmask 523264
      %v305 = vsel %vm303, %v282, 0
      %v308 = vsel %vm303, %v283, 0
      %v311 = vsel %vm303, %v284, 0
      %v314 = vsel %vm303, %v285, 0
      %v317 = vsel %vm303, %v286, 0
      %v320 = vsel %vm303, %v287, 0
      %322 = vmatprep.subr.mxu0 0.0
      %323 = vmatpush1.msra.mxu0 %v288
      %324 = vmatprep.subr.mxu0 0.0
      %325 = vmatpush1.msra.mxu0 %v289
      %326 = vmatprep.subr.mxu0 0.0
      %327 = vmatpush1.msra.mxu0 %v290
      %328 = vmatprep.subr.mxu0 0.0
      %329 = vmatpush1.msra.mxu0 %v291
      %330 = vmatprep.subr.mxu0 0.0
      %331 = vmatpush1.msra.mxu0 %v292
      %332 = vmatprep.subr.mxu0 0.0
      %333 = vmatpush1.msra.mxu0 %v293
      %334 = vmatprep.subr.mxu0 0.0
      %335 = vmatpush1.msra.mxu0 %v294
      %336 = vmatprep.subr.mxu0 0.0
      %337 = vmatpush1.msra.mxu0 %v295
      %338 = vmatprep.subr.mxu0 0.0
      %339 = vmatpush1.msra.mxu0 0.0
      %340 = vmatprep.subr.mxu0 0.0
      %341 = vmatpush1.msra.mxu0 0.0
      %342 = vmatprep.subr.mxu0 0.0
      %343 = vmatpush1.msra.mxu0 0.0
      %344 = vmatprep.subr.mxu0 0.0
      %345 = vmatpush1.msra.mxu0 0.0
      %346 = vmatprep.subr.mxu0 0.0
      %347 = vmatpush1.msra.mxu0 0.0
      %348 = vmatprep.subr.mxu0 0.0
      %349 = vmatpush1.msra.mxu0 0.0
      %350 = vmatprep.subr.mxu0 0.0
      %351 = vmatpush1.msra.mxu0 0.0
      %352 = vmatprep.subr.mxu0 0.0
      %353 = vmatpush1.msra.mxu0 0.0
      %354 = vmatprep.subr.mxu0 0.0
      %355 = vmatpush1.msra.mxu0 0.0
      %356 = vmatprep.subr.mxu0 0.0
      %357 = vmatpush1.msra.mxu0 0.0
      %358 = vmatprep.subr.mxu0 0.0
      %359 = vmatpush1.msra.mxu0 0.0
      %360 = vmatprep.subr.mxu0 0.0
      %361 = vmatpush1.msra.mxu0 0.0
      %362 = vmatprep.subr.mxu0 0.0
      %363 = vmatpush1.msra.mxu0 0.0
      %364 = vmatprep.subr.mxu0 0.0
      %365 = vmatpush1.msra.mxu0 0.0
      %366 = vmatprep.subr.mxu0 0.0
      %367 = vmatpush1.msra.mxu0 0.0
      %368 = vmatprep.subr.mxu0 0.0
      %369 = vmatpush1.msra.mxu0 0.0
      %370 = vmatprep.subr.mxu0 0.0
      %371 = vmatpush1.msra.mxu0 0.0
      %372 = vmatprep.subr.mxu0 0.0
      %373 = vmatpush1.msra.mxu0 0.0
      %374 = vmatprep.subr.mxu0 0.0
      %375 = vmatpush1.msra.mxu0 0.0
      %376 = vmatprep.subr.mxu0 0.0
      %377 = vmatpush1.msra.mxu0 0.0
      %378 = vmatprep.subr.mxu0 0.0
      %379 = vmatpush1.msra.mxu0 0.0
      %380 = vmatprep.subr.mxu0 0.0
      %381 = vmatpush1.msra.mxu0 0.0
      %382 = vmatprep.subr.mxu0 0.0
      %383 = vmatpush1.msra.mxu0 0.0
      %384 = vmatprep.subr.mxu0 0.0
      %385 = vmatpush1.msra.mxu0 0.0
      %386 = vmatprep.mubr.f32.mxu0 0.0
      %387 = vmatmul.mubr.f32.gmra.mrb[0].mxu0 %v305
      %v388 = vpop.f32.mrb[0].mxu0
      %v389 = vadd.f32 %v301, %v388
      %v390 = vpop.f32.mrb[0].mxu0
      %391 = vmatprep.mubr.f32.mxu0 0.0
      %392 = vmatmul.mubr.f32.gmra.mrb[0].mxu0 %v308
      %v393 = vpop.f32.mrb[0].mxu0
      %v394 = vadd.f32 %v301, %v393
      %v395 = vpop.f32.mrb[0].mxu0
      %396 = vmatprep.mubr.f32.mxu0 0.0
      %397 = vmatmul.mubr.f32.gmra.mrb[0].mxu0 %v311
      %v398 = vpop.f32.mrb[0].mxu0
      %v399 = vadd.f32 %v301, %v398
      %v400 = vpop.f32.mrb[0].mxu0
      %401 = vmatprep.mubr.f32.mxu0 0.0
      %402 = vmatmul.mubr.f32.gmra.mrb[0].mxu0 %v314
      %v403 = vpop.f32.mrb[0].mxu0
      %v404 = vadd.f32 %v301, %v403
      %v405 = vpop.f32.mrb[0].mxu0
      %406 = vmatprep.mubr.f32.mxu0 0.0
      %407 = vmatmul.mubr.f32.gmra.mrb[0].mxu0 %v317
      %v408 = vpop.f32.mrb[0].mxu0
      %v409 = vadd.f32 %v301, %v408
      %v410 = vpop.f32.mrb[0].mxu0
      %411 = vmatprep.mubr.f32.mxu0 0.0
      %412 = vmatmul.mubr.f32.gmra.mrb[0].mxu0 %v320
      %v413 = vpop.f32.mrb[0].mxu0
      %v414 = vadd.f32 %v301, %v413
      %v415 = vpop.f32.mrb[0].mxu0
      %416 = vdwg.mxu0
      %v417 = vmax.f32 %v389, 0.0
      %v418 = vmax.f32 %v394, 0.0
      %v419 = vmax.f32 %v399, 0.0
      %v420 = vmax.f32 %v404, 0.0
      %v421 = vmax.f32 %v409, 0.0
      %v422 = vmax.f32 %v414, 0.0
      %v423 = vld [vmem:[%s3] sm:$0xff]
      %v424 = vld [vmem:[%s3 + $0x8] sm:$0xff]
      %v425 = vld [vmem:[%s3 + $0x10] sm:$0xff]
      %v426 = vld [vmem:[%s3 + $0x18] sm:$0xff]
      %v427 = vld [vmem:[%s3 + $0x20] sm:$0xff]
      %v428 = vld [vmem:[%s3 + $0x28] sm:$0xff]
      %v429 = vld [vmem:[%s3 + $0x30] sm:$0xff]
      %v430 = vld [vmem:[%s3 + $0x38] sm:$0xff]
      %v431 = vld [vmem:[%s4] sm:$0x1]
      %v433 = vlaneseq
      %v434 = vshrl.u32 %v433, 7
      %v435 = vsub.s32 0, %v434
      %v436 = vrot.slane %v431, %v435
      %v439 = vsel %vm303, %v417, 0
      %v442 = vsel %vm303, %v418, 0
      %v445 = vsel %vm303, %v419, 0
      %v448 = vsel %vm303, %v420, 0
      %v451 = vsel %vm303, %v421, 0
      %v454 = vsel %vm303, %v422, 0
      %456 = vmatprep.subr.mxu0 0.0
      %457 = vmatpush1.msra.mxu0 %v423
      %458 = vmatprep.subr.mxu0 0.0
      %459 = vmatpush1.msra.mxu0 %v424
      %460 = vmatprep.subr.mxu0 0.0
      %461 = vmatpush1.msra.mxu0 %v425
      %462 = vmatprep.subr.mxu0 0.0
      %463 = vmatpush1.msra.mxu0 %v426
      %464 = vmatprep.subr.mxu0 0.0
      %465 = vmatpush1.msra.mxu0 %v427
      %466 = vmatprep.subr.mxu0 0.0
      %467 = vmatpush1.msra.mxu0 %v428
      %468 = vmatprep.subr.mxu0 0.0
      %469 = vmatpush1.msra.mxu0 %v429
      %470 = vmatprep.subr.mxu0 0.0
      %471 = vmatpush1.msra.mxu0 %v430
      %472 = vmatprep.subr.mxu0 0.0
      %473 = vmatpush1.msra.mxu0 0.0
      %474 = vmatprep.subr.mxu0 0.0
      %475 = vmatpush1.msra.mxu0 0.0
      %476 = vmatprep.subr.mxu0 0.0
      %477 = vmatpush1.msra.mxu0 0.0
      %478 = vmatprep.subr.mxu0 0.0
      %479 = vmatpush1.msra.mxu0 0.0
      %480 = vmatprep.subr.mxu0 0.0
      %481 = vmatpush1.msra.mxu0 0.0
      %482 = vmatprep.subr.mxu0 0.0
      %483 = vmatpush1.msra.mxu0 0.0
      %484 = vmatprep.subr.mxu0 0.0
      %485 = vmatpush1.msra.mxu0 0.0
      %486 = vmatprep.subr.mxu0 0.0
      %487 = vmatpush1.msra.mxu0 0.0
      %488 = vmatprep.subr.mxu0 0.0
      %489 = vmatpush1.msra.mxu0 0.0
      %490 = vmatprep.subr.mxu0 0.0
      %491 = vmatpush1.msra.mxu0 0.0
      %492 = vmatprep.subr.mxu0 0.0
      %493 = vmatpush1.msra.mxu0 0.0
      %494 = vmatprep.subr.mxu0 0.0
      %495 = vmatpush1.msra.mxu0 0.0
      %496 = vmatprep.subr.mxu0 0.0
      %497 = vmatpush1.msra.mxu0 0.0
      %498 = vmatprep.subr.mxu0 0.0
      %499 = vmatpush1.msra.mxu0 0.0
      %500 = vmatprep.subr.mxu0 0.0
      %501 = vmatpush1.msra.mxu0 0.0
      %502 = vmatprep.subr.mxu0 0.0
      %503 = vmatpush1.msra.mxu0 0.0
      %504 = vmatprep.subr.mxu0 0.0
      %505 = vmatpush1.msra.mxu0 0.0
      %506 = vmatprep.subr.mxu0 0.0
      %507 = vmatpush1.msra.mxu0 0.0
      %508 = vmatprep.subr.mxu0 0.0
      %509 = vmatpush1.msra.mxu0 0.0
      %510 = vmatprep.subr.mxu0 0.0
      %511 = vmatpush1.msra.mxu0 0.0
      %512 = vmatprep.subr.mxu0 0.0
      %513 = vmatpush1.msra.mxu0 0.0
      %514 = vmatprep.subr.mxu0 0.0
      %515 = vmatpush1.msra.mxu0 0.0
      %516 = vmatprep.subr.mxu0 0.0
      %517 = vmatpush1.msra.mxu0 0.0
      %518 = vmatprep.subr.mxu0 0.0
      %519 = vmatpush1.msra.mxu0 0.0
      %520 = vmatprep.mubr.f32.mxu0 0.0
      %521 = vmatmul.mubr.f32.gmra.mrb[0].mxu0 %v439
      %v522 = vpop.f32.mrb[0].mxu0
      %v523 = vadd.f32 %v436, %v522
      %v524 = vpop.f32.mrb[0].mxu0
      %525 = vmatprep.mubr.f32.mxu0 0.0
      %526 = vmatmul.mubr.f32.gmra.mrb[0].mxu0 %v442
      %v527 = vpop.f32.mrb[0].mxu0
      %v528 = vadd.f32 %v436, %v527
      %v529 = vpop.f32.mrb[0].mxu0
      %530 = vmatprep.mubr.f32.mxu0 0.0
      %531 = vmatmul.mubr.f32.gmra.mrb[0].mxu0 %v445
      %v532 = vpop.f32.mrb[0].mxu0
      %v533 = vadd.f32 %v436, %v532
      %v534 = vpop.f32.mrb[0].mxu0
      %535 = vmatprep.mubr.f32.mxu0 0.0
      %536 = vmatmul.mubr.f32.gmra.mrb[0].mxu0 %v448
      %v537 = vpop.f32.mrb[0].mxu0
      %v538 = vadd.f32 %v436, %v537
      %v539 = vpop.f32.mrb[0].mxu0
      %540 = vmatprep.mubr.f32.mxu0 0.0
      %541 = vmatmul.mubr.f32.gmra.mrb[0].mxu0 %v451
      %v542 = vpop.f32.mrb[0].mxu0
      %v543 = vadd.f32 %v436, %v542
      %v544 = vpop.f32.mrb[0].mxu0
      %545 = vmatprep.mubr.f32.mxu0 0.0
      %546 = vmatmul.mubr.f32.gmra.mrb[0].mxu0 %v454
      %v547 = vpop.f32.mrb[0].mxu0
      %v548 = vadd.f32 %v436, %v547
      %v549 = vpop.f32.mrb[0].mxu0
      %550 = vdwg.mxu0
      %v551 = vmax.f32 %v523, 0.0
      %v552 = vmax.f32 %v528, 0.0
      %v553 = vmax.f32 %v533, 0.0
      %v554 = vmax.f32 %v538, 0.0
      %v555 = vmax.f32 %v543, 0.0
      %v556 = vmax.f32 %v548, 0.0
      %v557 = vld [vmem:[%s5] sm:$0xff]
      %v558 = vld [vmem:[%s5 + $0x8] sm:$0xff]
      %v559 = vld [vmem:[%s5 + $0x10] sm:$0xff]
      %v560 = vld [vmem:[%s5 + $0x18] sm:$0xff]
      %v561 = vld [vmem:[%s5 + $0x20] sm:$0xff]
      %v562 = vld [vmem:[%s5 + $0x28] sm:$0xff]
      %v563 = vld [vmem:[%s5 + $0x30] sm:$0xff]
      %v564 = vld [vmem:[%s5 + $0x38] sm:$0xff]
      %v565 = vld [vmem:[%s6] sm:$0x1]
      %v567 = vlaneseq
      %v568 = vshrl.u32 %v567, 7
      %v569 = vsub.s32 0, %v568
      %v570 = vrot.slane %v565, %v569
      %v573 = vsel %vm303, %v551, 0
      %v576 = vsel %vm303, %v552, 0
      %v579 = vsel %vm303, %v553, 0
      %v582 = vsel %vm303, %v554, 0
      %v585 = vsel %vm303, %v555, 0
      %v588 = vsel %vm303, %v556, 0
      %590 = vmatprep.subr.mxu0 0.0
      %591 = vmatpush1.msra.mxu0 %v557
      %592 = vmatprep.subr.mxu0 0.0
      %593 = vmatpush1.msra.mxu0 %v558
      %594 = vmatprep.subr.mxu0 0.0
      %595 = vmatpush1.msra.mxu0 %v559
      %596 = vmatprep.subr.mxu0 0.0
      %597 = vmatpush1.msra.mxu0 %v560
      %598 = vmatprep.subr.mxu0 0.0
      %599 = vmatpush1.msra.mxu0 %v561
      %600 = vmatprep.subr.mxu0 0.0
      %601 = vmatpush1.msra.mxu0 %v562
      %602 = vmatprep.subr.mxu0 0.0
      %603 = vmatpush1.msra.mxu0 %v563
      %604 = vmatprep.subr.mxu0 0.0
      %605 = vmatpush1.msra.mxu0 %v564
      %606 = vmatprep.subr.mxu0 0.0
      %607 = vmatpush1.msra.mxu0 0.0
      %608 = vmatprep.subr.mxu0 0.0
      %609 = vmatpush1.msra.mxu0 0.0
      %610 = vmatprep.subr.mxu0 0.0
      %611 = vmatpush1.msra.mxu0 0.0
      %612 = vmatprep.subr.mxu0 0.0
      %613 = vmatpush1.msra.mxu0 0.0
      %614 = vmatprep.subr.mxu0 0.0
      %615 = vmatpush1.msra.mxu0 0.0
      %616 = vmatprep.subr.mxu0 0.0
      %617 = vmatpush1.msra.mxu0 0.0
      %618 = vmatprep.subr.mxu0 0.0
      %619 = vmatpush1.msra.mxu0 0.0
      %620 = vmatprep.subr.mxu0 0.0
      %621 = vmatpush1.msra.mxu0 0.0
      %622 = vmatprep.subr.mxu0 0.0
      %623 = vmatpush1.msra.mxu0 0.0
      %624 = vmatprep.subr.mxu0 0.0
      %625 = vmatpush1.msra.mxu0 0.0
      %626 = vmatprep.subr.mxu0 0.0
      %627 = vmatpush1.msra.mxu0 0.0
      %628 = vmatprep.subr.mxu0 0.0
      %629 = vmatpush1.msra.mxu0 0.0
      %630 = vmatprep.subr.mxu0 0.0
      %631 = vmatpush1.msra.mxu0 0.0
      %632 = vmatprep.subr.mxu0 0.0
      %633 = vmatpush1.msra.mxu0 0.0
      %634 = vmatprep.subr.mxu0 0.0
      %635 = vmatpush1.msra.mxu0 0.0
      %636 = vmatprep.subr.mxu0 0.0
      %637 = vmatpush1.msra.mxu0 0.0
      %638 = vmatprep.subr.mxu0 0.0
      %639 = vmatpush1.msra.mxu0 0.0
      %640 = vmatprep.subr.mxu0 0.0
      %641 = vmatpush1.msra.mxu0 0.0
      %642 = vmatprep.subr.mxu0 0.0
      %643 = vmatpush1.msra.mxu0 0.0
      %644 = vmatprep.subr.mxu0 0.0
      %645 = vmatpush1.msra.mxu0 0.0
      %646 = vmatprep.subr.mxu0 0.0
      %647 = vmatpush1.msra.mxu0 0.0
      %648 = vmatprep.subr.mxu0 0.0
      %649 = vmatpush1.msra.mxu0 0.0
      %650 = vmatprep.subr.mxu0 0.0
      %651 = vmatpush1.msra.mxu0 0.0
      %652 = vmatprep.subr.mxu0 0.0
      %653 = vmatpush1.msra.mxu0 0.0
      %654 = vmatprep.mubr.f32.mxu0 0.0
      %655 = vmatmul.mubr.f32.gmra.mrb[0].mxu0 %v573
      %v656 = vpop.f32.mrb[0].mxu0
      %v657 = vadd.f32 %v570, %v656
      %v658 = vpop.f32.mrb[0].mxu0
      %659 = vmatprep.mubr.f32.mxu0 0.0
      %660 = vmatmul.mubr.f32.gmra.mrb[0].mxu0 %v576
      %v661 = vpop.f32.mrb[0].mxu0
      %v662 = vadd.f32 %v570, %v661
      %v663 = vpop.f32.mrb[0].mxu0
      %664 = vmatprep.mubr.f32.mxu0 0.0
      %665 = vmatmul.mubr.f32.gmra.mrb[0].mxu0 %v579
      %v666 = vpop.f32.mrb[0].mxu0
      %v667 = vadd.f32 %v570, %v666
      %v668 = vpop.f32.mrb[0].mxu0
      %669 = vmatprep.mubr.f32.mxu0 0.0
      %670 = vmatmul.mubr.f32.gmra.mrb[0].mxu0 %v582
      %v671 = vpop.f32.mrb[0].mxu0
      %v672 = vadd.f32 %v570, %v671
      %v673 = vpop.f32.mrb[0].mxu0
      %674 = vmatprep.mubr.f32.mxu0 0.0
      %675 = vmatmul.mubr.f32.gmra.mrb[0].mxu0 %v585
      %v676 = vpop.f32.mrb[0].mxu0
      %v677 = vadd.f32 %v570, %v676
      %v678 = vpop.f32.mrb[0].mxu0
      %679 = vmatprep.mubr.f32.mxu0 0.0
      %680 = vmatmul.mubr.f32.gmra.mrb[0].mxu0 %v588
      %v681 = vpop.f32.mrb[0].mxu0
      %v682 = vadd.f32 %v570, %v681
      %v683 = vpop.f32.mrb[0].mxu0
      %684 = vdwg.mxu0
      %v685 = vmax.f32 %v657, 0.0
      %v686 = vmax.f32 %v662, 0.0
      %v687 = vmax.f32 %v667, 0.0
      %v688 = vmax.f32 %v672, 0.0
      %v689 = vmax.f32 %v677, 0.0
      %v690 = vmax.f32 %v682, 0.0
      %vm691 = vcmp.ne.f32.partialorder %v657, %v657
      %vm692 = vcmp.ne.f32.partialorder %v662, %v662
      %vm693 = vcmp.ne.f32.partialorder %v667, %v667
      %vm694 = vcmp.ne.f32.partialorder %v672, %v672
      %vm695 = vcmp.ne.f32.partialorder %v677, %v677
      %vm696 = vcmp.ne.f32.partialorder %v682, %v682
      %v697 = vadd.f32 %v657, 0.0
      %v698 = vadd.f32 %v662, 0.0
      %v699 = vadd.f32 %v667, 0.0
      %v700 = vadd.f32 %v672, 0.0
      %v701 = vadd.f32 %v677, 0.0
      %v702 = vadd.f32 %v682, 0.0
      %v703 = vand.u32 2147483647, %v657
      %v704 = vand.u32 2147483647, %v662
      %v705 = vand.u32 2147483647, %v667
      %v706 = vand.u32 2147483647, %v672
      %v707 = vand.u32 2147483647, %v677
      %v708 = vand.u32 2147483647, %v682
      %v709 = vsub.f32 0.0, %v703
      %v710 = vsub.f32 0.0, %v704
      %v711 = vsub.f32 0.0, %v705
      %v712 = vsub.f32 0.0, %v706
      %v713 = vsub.f32 0.0, %v707
      %v714 = vsub.f32 0.0, %v708
      %v715 = vmul.f32 %v709, 1.442695
      %v716 = vpow.pop %v715
      %v717 = vmul.f32 %v710, 1.442695
      %v718 = vpow.pop %v717
      %v719 = vmul.f32 %v711, 1.442695
      %v720 = vpow.pop %v719
      %v721 = vmul.f32 %v712, 1.442695
      %v722 = vpow.pop %v721
      %v723 = vmul.f32 %v713, 1.442695
      %v724 = vpow.pop %v723
      %v725 = vmul.f32 %v714, 1.442695
      %v726 = vpow.pop %v725
      %v727 = vadd.f32 %v716, 1.0
      %v728 = vlog2.pop %v727
      %v729 = vmul.f32 %v728, 0.6931472
      %v730 = vmul.f32 -0.5, %v716
      %v731 = vadd.f32 %v730, 1.0
      %v732 = vmul.f32 %v731, %v716
      %v733 = vand.u32 2147483647, %v716
      %vm734 = vcmp.lt.f32.partialorder %v733, 0.0004427343
      %v735 = vsel %vm734, %v732, %v729
      %v736 = vadd.f32 %v718, 1.0
      %v737 = vlog2.pop %v736
      %v738 = vmul.f32 %v737, 0.6931472
      %v739 = vmul.f32 -0.5, %v718
      %v740 = vadd.f32 %v739, 1.0
      %v741 = vmul.f32 %v740, %v718
      %v742 = vand.u32 2147483647, %v718
      %vm743 = vcmp.lt.f32.partialorder %v742, 0.0004427343
      %v744 = vsel %vm743, %v741, %v738
      %v745 = vadd.f32 %v720, 1.0
      %v746 = vlog2.pop %v745
      %v747 = vmul.f32 %v746, 0.6931472
      %v748 = vmul.f32 -0.5, %v720
      %v749 = vadd.f32 %v748, 1.0
      %v750 = vmul.f32 %v749, %v720
      %v751 = vand.u32 2147483647, %v720
      %vm752 = vcmp.lt.f32.partialorder %v751, 0.0004427343
      %v753 = vsel %vm752, %v750, %v747
      %v754 = vadd.f32 %v722, 1.0
      %v755 = vlog2.pop %v754
      %v756 = vmul.f32 %v755, 0.6931472
      %v757 = vmul.f32 -0.5, %v722
      %v758 = vadd.f32 %v757, 1.0
      %v759 = vmul.f32 %v758, %v722
      %v760 = vand.u32 2147483647, %v722
      %vm761 = vcmp.lt.f32.partialorder %v760, 0.0004427343
      %v762 = vsel %vm761, %v759, %v756
      %v763 = vadd.f32 %v724, 1.0
      %v764 = vlog2.pop %v763
      %v765 = vmul.f32 %v764, 0.6931472
      %v766 = vmul.f32 -0.5, %v724
      %v767 = vadd.f32 %v766, 1.0
      %v768 = vmul.f32 %v767, %v724
      %v769 = vand.u32 2147483647, %v724
      %vm770 = vcmp.lt.f32.partialorder %v769, 0.0004427343
      %v771 = vsel %vm770, %v768, %v765
      %v772 = vadd.f32 %v726, 1.0
      %v773 = vlog2.pop %v772
      %v774 = vmul.f32 %v773, 0.6931472
      %v775 = vmul.f32 -0.5, %v726
      %v776 = vadd.f32 %v775, 1.0
      %v777 = vmul.f32 %v776, %v726
      %v778 = vand.u32 2147483647, %v726
      %vm779 = vcmp.lt.f32.partialorder %v778, 0.0004427343
      %v780 = vsel %vm779, %v777, %v774
      %v781 = vadd.f32 %v685, %v735
      %v782 = vadd.f32 %v686, %v744
      %v783 = vadd.f32 %v687, %v753
      %v784 = vadd.f32 %v688, %v762
      %v785 = vadd.f32 %v689, %v771
      %v786 = vadd.f32 %v690, %v780
      %v787 = vsel %vm691, %v697, %v781
      %v788 = vsel %vm692, %v698, %v782
      %v789 = vsel %vm693, %v699, %v783
      %v790 = vsel %vm694, %v700, %v784
      %v791 = vsel %vm695, %v701, %v785
      %v792 = vsel %vm696, %v702, %v786
      %v793 = vadd.f32 %v787, 0.01
      %v794 = vadd.f32 %v788, 0.01
      %v795 = vadd.f32 %v789, 0.01
      %v796 = vadd.f32 %v790, 0.01
      %v797 = vadd.f32 %v791, 0.01
      %v798 = vadd.f32 %v792, 0.01
      %v799 = vtanh.pop %v657
      %v800 = vtanh.pop %v662
      %v801 = vtanh.pop %v667
      %v802 = vtanh.pop %v672
      %v803 = vtanh.pop %v677
      %v804 = vtanh.pop %v682
      %v805 = vmul.f32 %v799, 0.9
      %v806 = vmul.f32 %v800, 0.9
      %v807 = vmul.f32 %v801, 0.9
      %v808 = vmul.f32 %v802, 0.9
      %v809 = vmul.f32 %v803, 0.9
      %v810 = vmul.f32 %v804, 0.9
      %v811 = vlaneseq
      %v812 = vand.u32 %v811, 127
      %vm813 = vcmp.lt.s32.totalorder %v812, 2
      %vm814 = vcmp.lt.s32.totalorder %v812, 4
      %v815 = vsel %vm814, %v793, %v805
      %v816 = vsel %vm814, %v794, %v806
      %v817 = vsel %vm814, %v795, %v807
      %v818 = vsel %vm814, %v796, %v808
      %v819 = vsel %vm814, %v797, %v809
      %v820 = vsel %vm814, %v798, %v810
      %v821 = vsel %vm813, %v657, %v815
      %v822 = vsel %vm813, %v662, %v816
      %v823 = vsel %vm813, %v667, %v817
      %v824 = vsel %vm813, %v672, %v818
      %v825 = vsel %vm813, %v677, %v819
      %v826 = vsel %vm813, %v682, %v820
      %833 = vrot.lane.b32.xlu0 %v821, 5
      %v834 = vpop.permute.xlu0 %833
      %835 = vrot.lane.b32.xlu0 %v822, 5
      %v836 = vpop.permute.xlu0 %835
      %837 = vrot.lane.b32.xlu0 %v823, 5
      %v838 = vpop.permute.xlu0 %837
      %839 = vrot.lane.b32.xlu0 %v824, 5
      %v840 = vpop.permute.xlu0 %839
      %841 = vrot.lane.b32.xlu0 %v825, 5
      %v842 = vpop.permute.xlu0 %841
      %843 = vrot.lane.b32.xlu0 %v826, 5
      %v844 = vpop.permute.xlu0 %843
      %vm851 = vcmask 39936
      %v852 = vsel %vm851, %v657, %v834
      %v853 = vsel %vm851, %v662, %v836
      %v854 = vsel %vm851, %v667, %v838
      %v855 = vsel %vm851, %v672, %v840
      %v856 = vsel %vm851, %v677, %v842
      %v857 = vsel %vm851, %v682, %v844
      %vm858 = vcmask 80896
      %859 = vst.msk [vmem:[%s280] sm:$0xff] %vm858, %v852
      %860 = vst.msk [vmem:[%s280 + $0x8] sm:$0xff] %vm858, %v853
      %861 = vst.msk [vmem:[%s280 + $0x10] sm:$0xff] %vm858, %v854
      %862 = vst.msk [vmem:[%s280 + $0x18] sm:$0xff] %vm858, %v855
      %863 = vst.msk [vmem:[%s280 + $0x20] sm:$0xff] %vm858, %v856
      %864 = vst.msk [vmem:[%s280 + $0x28] sm:$0xff] %vm858, %v857
      %s865 = smul.u32 6, %s18
      %p866 = scmp.lt.s32.totalorder %s865, 11
      %s867 = scalar_select %p866, %s865, 11
      %s868 = smul.addr %s867, 8
      %s869 = scalar_lea.vmem %s7, %s868
      // Predicated region
      $region49: #{tpu_custom_call.1} parent=47 // pred_check
        %p870 = pneg %p188
      $region50: #{tpu_custom_call.1} parent=47 // pred_check_branch
        %872 = sbr.rel (%p870) target = $region52
      $region51: #{tpu_custom_call.1} parent=47 // pred_region
        %s873 = smul.u32 6, %s18
      $region52: #{tpu_custom_call.1} parent=47 // pred_fallthru
        _
    $region48: #{tpu_custom_call.1} parent=5 // pred_fallthru
      _
    %p874 = scmp.le.s32.totalorder 2, %s13
    // Predicated region
    $region53: #{tpu_custom_call.1} parent=5 // pred_check
      %p875 = pneg %p874
    $region54: #{tpu_custom_call.1} parent=5 // pred_check_branch
      %877 = sbr.rel (%p875) target = $region56
    $region55: #{tpu_custom_call.1} parent=5 // pred_region
      %s878 = ssub.s32 %s13, 2
      // Predicated region
      $region57: #{tpu_custom_call.1} parent=55 // pred_check
        %p879 = pneg %p194
      $region58: #{tpu_custom_call.1} parent=55 // pred_check_branch
        %881 = sbr.rel (%p879) target = $region60
      $region59: #{tpu_custom_call.1} parent=55 // pred_region
        %s882 = smul.u32 6, %s19
        %p883 = scmp.lt.s32.totalorder %s882, 11
        %s884 = scalar_select %p883, %s882, 11
        %s885 = smul.addr %s884, 8
        %s886 = scalar_lea.vmem %s7, %s885
      $region60: #{tpu_custom_call.1} parent=55 // pred_fallthru
        _
    $region56: #{tpu_custom_call.1} parent=5 // pred_fallthru
      _
  $region6: #{tpu_custom_call.1} parent=0 // loop_footer
    %s17 = sadd.s32 1, %s13
  $region7: #{tpu_custom_call.1} parent=0 // loop_footer_branch
    %12 = sbr.rel target = $region3
  $region8: #{tpu_custom_call.1} parent=0 // loop_exit
    _

</llo_original>
